<compile_context>
chip_gen: v7x
topology: tpu7x:2x2x1
jax: 0.10.0
libtpu: 0.0.40
codegen_flags: <defaults>
</compile_context>

<pallas_src>
import jax
import jax.numpy as jnp
from jax.experimental import pallas as pl
from jax.experimental.pallas import tpu as pltpu

_LANE = 128
_BF16_TILE = 16 * _LANE  # 2048: minimum dense bf16 (sublane, lane) tile


def _round_up(n, m):
    return ((n + m - 1) // m) * m


def _sigmoid(z):
    # Single EUP transcendental per sigmoid; the extra mul/add land on VALU
    # slots that have slack. Exact (no approx reciprocal).
    return 0.5 + 0.5 * jnp.tanh(0.5 * z)


def mlp_kernel(w1_ref, b1_ref, w2_ref, b2_ref, x_ref, o_ref):
    # x_ref: (2, TB_ROWS, 128) bf16 VMEM; o_ref: (TB_ROWS, 128) bf16 VMEM.
    # Weights/biases: f32 scalars in SMEM (grid-invariant).
    x0 = x_ref[0].astype(jnp.float32)  # (TB_ROWS, 128)
    x1 = x_ref[1].astype(jnp.float32)  # (TB_ROWS, 128)

    # Layer 1: h_j = sigmoid(x0*w1[0,j] + x1*w1[1,j] + b1[j])  -- pure VPU work.
    h0 = _sigmoid(x0 * w1_ref[0, 0] + x1 * w1_ref[1, 0] + b1_ref[0])
    h1 = _sigmoid(x0 * w1_ref[0, 1] + x1 * w1_ref[1, 1] + b1_ref[1])
    h2 = _sigmoid(x0 * w1_ref[0, 2] + x1 * w1_ref[1, 2] + b1_ref[2])

    # Layer 2: y = sigmoid(h0*w2[0] + h1*w2[1] + h2*w2[2] + b2)
    y = _sigmoid(h0 * w2_ref[0] + h1 * w2_ref[1] + h2 * w2_ref[2] + b2_ref[0])

    o_ref[...] = y.astype(o_ref.dtype)


def simple_nn_forward(x, w1, b1, w2, b2, *, block_rows=16 * 1024,
                      x_feature_major=None):
    """Forward pass of SimpleNN.

    x: (B, 2) f32. w1: (2, 3), b1: (3,), w2: (3,), b2: (1,). Returns (B, 1) f32.
    block_rows: rows of 128 batch elements per grid step (multiple of 16).
    x_feature_major: optional pre-laid-out bf16 slab of shape (2, rows, 128)
                     to skip the wrapper-side relayout.
    """
    B = x.shape[0]
    B_pad = _round_up(B, _BF16_TILE)
    rows = B_pad // _LANE                      # multiple of 16 (bf16 sublane tile)

    if x_feature_major is None:
        # Single fused relayout pass: cast -> transpose -> pad -> reshape.
        x_t = jnp.pad(x.astype(jnp.bfloat16).T, ((0, 0), (0, B_pad - B)))
        x_t = x_t.reshape(2, rows, _LANE)      # (2, rows, 128) bf16
    else:
        x_t = x_feature_major

    tb_rows = min(block_rows, rows)            # both are multiples of 16
    grid = (pl.cdiv(rows, tb_rows),)           # partial edge block handled by Pallas

    # VMEM budget: double-buffered input + output blocks (+ slack), capped so a
    # user-tuned block_rows still fits v7x's 64 MiB physical VMEM.
    x_blk_bytes = 2 * tb_rows * _LANE * 2
    o_blk_bytes = tb_rows * _LANE * 2
    vmem_limit = int(min(max(32 << 20, 2 * (x_blk_bytes + o_blk_bytes) + (4 << 20)),
                         64 << 20))

    cost = pl.CostEstimate(
        flops=30 * B_pad,                      # mul-adds + tanh-form sigmoid ops
        transcendentals=4 * B_pad,             # 4 tanh per batch element
        bytes_accessed=(2 * 2 + 1 * 2) * B_pad + 4 * (6 + 3 + 3 + 1),
    )

    out_slab = pl.pallas_call(
        mlp_kernel,
        out_shape=jax.ShapeDtypeStruct((rows, _LANE), jnp.bfloat16),
        grid=grid,
        in_specs=[
            # Grid-invariant scalar parameters: whole arrays resident in SMEM.
            pl.BlockSpec(memory_space=pltpu.MemorySpace.SMEM),   # w1 (2, 3)
            pl.BlockSpec(memory_space=pltpu.MemorySpace.SMEM),   # b1 (3,)
            pl.BlockSpec(memory_space=pltpu.MemorySpace.SMEM),   # w2 (3,)
            pl.BlockSpec(memory_space=pltpu.MemorySpace.SMEM),   # b2 (1,)
            # Activations: batch dense on (sublane, lane), pipelined over grid.
            pl.BlockSpec((2, tb_rows, _LANE), lambda i: (0, i, 0)),
        ],
        out_specs=pl.BlockSpec((tb_rows, _LANE), lambda i: (i, 0)),
        compiler_params=pltpu.CompilerParams(
            # Single batch axis marked parallel -> pipelined; on v7x this also
            # allows sharding across both TensorCores.
            dimension_semantics=("parallel",),
            vmem_limit_bytes=vmem_limit,
        ),
        cost_estimate=cost,
    )(w1.astype(jnp.float32), b1.astype(jnp.float32),
      w2.astype(jnp.float32), b2.astype(jnp.float32), x_t)

    return out_slab.reshape(B_pad)[:B].reshape(B, 1).astype(jnp.float32)


def init_params(key):
    # Deterministic init mimicking PyTorch nn.Linear default:
    # U(-1/sqrt(fan_in), 1/sqrt(fan_in)) for both weight and bias.
    k1, k2, k3, k4 = jax.random.split(key, 4)
    bound1 = 1.0 / jnp.sqrt(2.0)   # layer1 fan_in = 2
    bound2 = 1.0 / jnp.sqrt(3.0)   # layer2 fan_in = 3
    # Stored as (in, out) so the forward computes x @ W (== PyTorch x @ W.T).
    w1 = jax.random.uniform(k1, (2, 3), jnp.float32, -bound1, bound1)
    b1 = jax.random.uniform(k2, (3,), jnp.float32, -bound1, bound1)
    w2 = jax.random.uniform(k3, (3,), jnp.float32, -bound2, bound2)
    b2 = jax.random.uniform(k4, (1,), jnp.float32, -bound2, bound2)
    return w1, b1, w2, b2


if __name__ == "__main__":
    key = jax.random.PRNGKey(0)
    kx, kp = jax.random.split(key)

    B = 8
    x = jax.random.normal(kx, (B, 2), dtype=jnp.float32)
    w1, b1, w2, b2 = init_params(kp)

    out = simple_nn_forward(x, w1, b1, w2, b2)
    out = jax.block_until_ready(out)

    # Reference in plain JAX (same math as the PyTorch forward), using the same
    # bf16 input quantization the kernel's HBM layout applies.
    xq = x.astype(jnp.bfloat16).astype(jnp.float32)
    h_ref = jax.nn.sigmoid(xq @ w1 + b1[None, :])
    y_ref = jax.nn.sigmoid(h_ref @ w2[:, None] + b2[0])

    assert out.shape == (B, 1)
    # Remaining error is only the bf16 rounding of the stored output.
    assert jnp.allclose(out, y_ref, atol=5e-3, rtol=5e-3)

    print("KERNEL_OK")
</pallas_src>

<mosaic_0001>
module attributes {stable_mosaic.version = 11 : i64} {
  func.func @mlp_kernel(%arg0: i32, %arg1: memref<2x3xf32, #tpu.memory_space<smem>>, %arg2: memref<3xf32, #tpu.memory_space<smem>>, %arg3: memref<3xf32, #tpu.memory_space<smem>>, %arg4: memref<1xf32, #tpu.memory_space<smem>>, %arg5: memref<2x16x128xbf16, #tpu.memory_space<vmem>>, %arg6: memref<16x128xbf16, #tpu.memory_space<vmem>>) attributes {dimension_semantics = [#tpu.dimension_semantics<parallel>], iteration_bounds = array<i64: 1>, scalar_prefetch = 0 : i64, scratch_operands = 0 : i64, tpu.core_type = #tpu.core_type<tc>, window_params = [{transform_indices = @transform_0, window_bounds = array<i64: 2, 3>}, {transform_indices = @transform_1, window_bounds = array<i64: 3>}, {transform_indices = @transform_2, window_bounds = array<i64: 3>}, {transform_indices = @transform_3, window_bounds = array<i64: 1>}, {transform_indices = @transform_4, window_bounds = array<i64: 2, 16, 128>}, {transform_indices = @transform_5, window_bounds = array<i64: 16, 128>}]} {
    %c0 = arith.constant 0 : index
    %c0_0 = arith.constant 0 : index
    %c0_1 = arith.constant 0 : index
    %0 = vector.load %arg5[%c0, %c0_0, %c0_1] : memref<2x16x128xbf16, #tpu.memory_space<vmem>>, vector<1x16x128xbf16>
    %1 = vector.shape_cast %0 : vector<1x16x128xbf16> to vector<16x128xbf16>
    %2 = arith.extf %1 : vector<16x128xbf16> to vector<16x128xf32>
    %c1 = arith.constant 1 : index
    %c0_2 = arith.constant 0 : index
    %c0_3 = arith.constant 0 : index
    %3 = vector.load %arg5[%c1, %c0_2, %c0_3] : memref<2x16x128xbf16, #tpu.memory_space<vmem>>, vector<1x16x128xbf16>
    %4 = vector.shape_cast %3 : vector<1x16x128xbf16> to vector<16x128xbf16>
    %5 = arith.extf %4 : vector<16x128xbf16> to vector<16x128xf32>
    %c0_4 = arith.constant 0 : index
    %c0_5 = arith.constant 0 : index
    %6 = memref.load %arg1[%c0_4, %c0_5] : memref<2x3xf32, #tpu.memory_space<smem>>
    %7 = vector.broadcast %6 : f32 to vector<16x128xf32>
    %8 = arith.mulf %2, %7 : vector<16x128xf32>
    %c1_6 = arith.constant 1 : index
    %c0_7 = arith.constant 0 : index
    %9 = memref.load %arg1[%c1_6, %c0_7] : memref<2x3xf32, #tpu.memory_space<smem>>
    %10 = vector.broadcast %9 : f32 to vector<16x128xf32>
    %11 = arith.mulf %5, %10 : vector<16x128xf32>
    %12 = arith.addf %8, %11 : vector<16x128xf32>
    %c0_8 = arith.constant 0 : index
    %13 = memref.load %arg2[%c0_8] : memref<3xf32, #tpu.memory_space<smem>>
    %14 = vector.broadcast %13 : f32 to vector<16x128xf32>
    %15 = arith.addf %12, %14 : vector<16x128xf32>
    %cst = arith.constant 5.000000e-01 : f32
    %16 = vector.broadcast %cst : f32 to vector<16x128xf32>
    %17 = arith.mulf %16, %15 : vector<16x128xf32>
    %18 = math.tanh %17 : vector<16x128xf32>
    %cst_9 = arith.constant 5.000000e-01 : f32
    %19 = vector.broadcast %cst_9 : f32 to vector<16x128xf32>
    %20 = arith.mulf %19, %18 : vector<16x128xf32>
    %cst_10 = arith.constant 5.000000e-01 : f32
    %21 = vector.broadcast %cst_10 : f32 to vector<16x128xf32>
    %22 = arith.addf %21, %20 : vector<16x128xf32>
    %c0_11 = arith.constant 0 : index
    %c1_12 = arith.constant 1 : index
    %23 = memref.load %arg1[%c0_11, %c1_12] : memref<2x3xf32, #tpu.memory_space<smem>>
    %24 = vector.broadcast %23 : f32 to vector<16x128xf32>
    %25 = arith.mulf %2, %24 : vector<16x128xf32>
    %c1_13 = arith.constant 1 : index
    %c1_14 = arith.constant 1 : index
    %26 = memref.load %arg1[%c1_13, %c1_14] : memref<2x3xf32, #tpu.memory_space<smem>>
    %27 = vector.broadcast %26 : f32 to vector<16x128xf32>
    %28 = arith.mulf %5, %27 : vector<16x128xf32>
    %29 = arith.addf %25, %28 : vector<16x128xf32>
    %c1_15 = arith.constant 1 : index
    %30 = memref.load %arg2[%c1_15] : memref<3xf32, #tpu.memory_space<smem>>
    %31 = vector.broadcast %30 : f32 to vector<16x128xf32>
    %32 = arith.addf %29, %31 : vector<16x128xf32>
    %cst_16 = arith.constant 5.000000e-01 : f32
    %33 = vector.broadcast %cst_16 : f32 to vector<16x128xf32>
    %34 = arith.mulf %33, %32 : vector<16x128xf32>
    %35 = math.tanh %34 : vector<16x128xf32>
    %cst_17 = arith.constant 5.000000e-01 : f32
    %36 = vector.broadcast %cst_17 : f32 to vector<16x128xf32>
    %37 = arith.mulf %36, %35 : vector<16x128xf32>
    %cst_18 = arith.constant 5.000000e-01 : f32
    %38 = vector.broadcast %cst_18 : f32 to vector<16x128xf32>
    %39 = arith.addf %38, %37 : vector<16x128xf32>
    %c0_19 = arith.constant 0 : index
    %c2 = arith.constant 2 : index
    %40 = memref.load %arg1[%c0_19, %c2] : memref<2x3xf32, #tpu.memory_space<smem>>
    %41 = vector.broadcast %40 : f32 to vector<16x128xf32>
    %42 = arith.mulf %2, %41 : vector<16x128xf32>
    %c1_20 = arith.constant 1 : index
    %c2_21 = arith.constant 2 : index
    %43 = memref.load %arg1[%c1_20, %c2_21] : memref<2x3xf32, #tpu.memory_space<smem>>
    %44 = vector.broadcast %43 : f32 to vector<16x128xf32>
    %45 = arith.mulf %5, %44 : vector<16x128xf32>
    %46 = arith.addf %42, %45 : vector<16x128xf32>
    %c2_22 = arith.constant 2 : index
    %47 = memref.load %arg2[%c2_22] : memref<3xf32, #tpu.memory_space<smem>>
    %48 = vector.broadcast %47 : f32 to vector<16x128xf32>
    %49 = arith.addf %46, %48 : vector<16x128xf32>
    %cst_23 = arith.constant 5.000000e-01 : f32
    %50 = vector.broadcast %cst_23 : f32 to vector<16x128xf32>
    %51 = arith.mulf %50, %49 : vector<16x128xf32>
    %52 = math.tanh %51 : vector<16x128xf32>
    %cst_24 = arith.constant 5.000000e-01 : f32
    %53 = vector.broadcast %cst_24 : f32 to vector<16x128xf32>
    %54 = arith.mulf %53, %52 : vector<16x128xf32>
    %cst_25 = arith.constant 5.000000e-01 : f32
    %55 = vector.broadcast %cst_25 : f32 to vector<16x128xf32>
    %56 = arith.addf %55, %54 : vector<16x128xf32>
    %c0_26 = arith.constant 0 : index
    %57 = memref.load %arg3[%c0_26] : memref<3xf32, #tpu.memory_space<smem>>
    %58 = vector.broadcast %57 : f32 to vector<16x128xf32>
    %59 = arith.mulf %22, %58 : vector<16x128xf32>
    %c1_27 = arith.constant 1 : index
    %60 = memref.load %arg3[%c1_27] : memref<3xf32, #tpu.memory_space<smem>>
    %61 = vector.broadcast %60 : f32 to vector<16x128xf32>
    %62 = arith.mulf %39, %61 : vector<16x128xf32>
    %63 = arith.addf %59, %62 : vector<16x128xf32>
    %c2_28 = arith.constant 2 : index
    %64 = memref.load %arg3[%c2_28] : memref<3xf32, #tpu.memory_space<smem>>
    %65 = vector.broadcast %64 : f32 to vector<16x128xf32>
    %66 = arith.mulf %56, %65 : vector<16x128xf32>
    %67 = arith.addf %63, %66 : vector<16x128xf32>
    %c0_29 = arith.constant 0 : index
    %68 = memref.load %arg4[%c0_29] : memref<1xf32, #tpu.memory_space<smem>>
    %69 = vector.broadcast %68 : f32 to vector<16x128xf32>
    %70 = arith.addf %67, %69 : vector<16x128xf32>
    %cst_30 = arith.constant 5.000000e-01 : f32
    %71 = vector.broadcast %cst_30 : f32 to vector<16x128xf32>
    %72 = arith.mulf %71, %70 : vector<16x128xf32>
    %73 = math.tanh %72 : vector<16x128xf32>
    %cst_31 = arith.constant 5.000000e-01 : f32
    %74 = vector.broadcast %cst_31 : f32 to vector<16x128xf32>
    %75 = arith.mulf %74, %73 : vector<16x128xf32>
    %cst_32 = arith.constant 5.000000e-01 : f32
    %76 = vector.broadcast %cst_32 : f32 to vector<16x128xf32>
    %77 = arith.addf %76, %75 : vector<16x128xf32>
    %78 = arith.truncf %77 : vector<16x128xf32> to vector<16x128xbf16>
    %c0_33 = arith.constant 0 : index
    %c0_34 = arith.constant 0 : index
    %79 = vector.load %arg6[%c0_33, %c0_34] : memref<16x128xbf16, #tpu.memory_space<vmem>>, vector<16x128xbf16>
    tpu.vector_store %arg6[%c0_33, %c0_34], %78 {strides = array<i32>} : memref<16x128xbf16, #tpu.memory_space<vmem>>, vector<16x128xbf16>,
    return
  }
  func.func @transform_0(%arg0: i32) -> (i32, i32) {
    %c0_i32 = arith.constant 0 : i32
    %c0_i32_0 = arith.constant 0 : i32
    %c0_i32_1 = arith.constant 0 : i32
    return %c0_i32, %c0_i32_0 : i32, i32
  }
  func.func @transform_1(%arg0: i32) -> i32 {
    %c0_i32 = arith.constant 0 : i32
    %c0_i32_0 = arith.constant 0 : i32
    return %c0_i32 : i32
  }
  func.func @transform_2(%arg0: i32) -> i32 {
    %c0_i32 = arith.constant 0 : i32
    %c0_i32_0 = arith.constant 0 : i32
    return %c0_i32 : i32
  }
  func.func @transform_3(%arg0: i32) -> i32 {
    %c0_i32 = arith.constant 0 : i32
    %c0_i32_0 = arith.constant 0 : i32
    return %c0_i32 : i32
  }
  func.func @transform_4(%arg0: i32) -> (i32, i32, i32) {
    %c0_i32 = arith.constant 0 : i32
    %c0_i32_0 = arith.constant 0 : i32
    %c0_i32_1 = arith.constant 0 : i32
    return %c0_i32, %arg0, %c0_i32_0 : i32, i32, i32
  }
  func.func @transform_5(%arg0: i32) -> (i32, i32) {
    %c0_i32 = arith.constant 0 : i32
    %c0_i32_0 = arith.constant 0 : i32
    return %arg0, %c0_i32 : i32, i32
  }
}

</mosaic_0001>

<llo_original>
// kernel: tpu_custom_call.1
$region0: #{tpu_custom_call.1}
  #allocation0 [shape = 'u32[]', space=smem, size = 0x4, offset = 0x4, fixed_abs, tag = 'smem constant byte address 0x4 - core index']
  #allocation1 [shape = 'u32[144,128]{1,0:T(1,128)}', space=vmem, size = 0x12000, scoped, tag = 'internal scratch']
  #allocation2 [shape = 'f32[1]{0:T(128)S(6)}', space=smem, size = 0x200, scoped, tag = 'scoped memory for tpu_custom_call.1']
  %s0 = inlined_call_operand.vmem [shape: f32[2,3], index: 0, kind: input, shape index: {}]
  %s1 = inlined_call_operand.vmem [shape: f32[3], index: 1, kind: input, shape index: {}]
  %s2 = inlined_call_operand.vmem [shape: f32[3], index: 2, kind: input, shape index: {}]
  %s3 = inlined_call_operand.<no memory space> [shape: f32[1], index: 3, kind: input, shape index: {}]
  %s4 = inlined_call_operand.hbm [shape: bf16[2,16,128], index: 4, kind: input, shape index: {}]
  %s5 = inlined_call_operand.hbm [shape: bf16[16,128], index: 5, kind: output, shape index: {}]
  %s6 = sld [smem:[#allocation0]]
  $region46: #{tpu_custom_call.1} parent=0
    _
  %s8 = ssub.s32 1, %s6
  %s9 = scalar_select 0, %s8, %s6
  %10 = sst [smem:[#allocation2]] %s3
  $region1: #{tpu_custom_call.1} parent=0
    #allocation3 [shape = 'u8[1024]{0}', space=smem, size = 0x400, scoped, tag = 'input window, operand 0, single buffered']
    #allocation4 [shape = 's32[1]{0}', space=sflag, size = 0x4, scoped, tag = 'scoped memory for tpu_custom_call.1']
    #allocation5 [shape = 's32[1]{0}', space=sflag, size = 0x4, scoped, tag = 'scoped memory for tpu_custom_call.1']
    #allocation6 [shape = 's32[1]{0}', space=sflag, size = 0x4, scoped, tag = 'scoped memory for tpu_custom_call.1']
    #allocation7 [shape = 'u8[512]{0}', space=smem, size = 0x200, scoped, tag = 'input window, operand 1, single buffered']
    #allocation8 [shape = 's32[1]{0}', space=sflag, size = 0x4, scoped, tag = 'scoped memory for tpu_custom_call.1']
    #allocation9 [shape = 'u8[512]{0}', space=smem, size = 0x200, scoped, tag = 'input window, operand 2, single buffered']
    #allocation10 [shape = 'u8[8192]{0}', space=vmem, size = 0x2000, scoped, tag = 'input window, operand 4, single buffered']
    #allocation11 [shape = 'u8[4096]{0}', space=vmem, size = 0x1000, scoped, tag = 'output window, operand 0, single buffered']
    %11 = vsyncpa [#allocation6], 0
    %12 = vsyncpa [#allocation8], 0
    %13 = vsyncpa [#allocation4], 0
    %14 = vsyncpa [#allocation5], 0
    // Predicated region
    $region2: #{tpu_custom_call.1} parent=1 // pred_check
      _
    $region3: #{tpu_custom_call.1} parent=1 // pred_check_branch
      %16 = sbr.rel (0) target = $region5
    $region4: #{tpu_custom_call.1} parent=1 // pred_region
      %s18 = ssub.s32 32, 32
      %19 = vsyncadd [#allocation6], %s18
      %s21 = sshll.u32 %s0, 4
      %s22 = int_to_ptr.vmem [resolvable:$true] %s21
      %24 = dma.vmem_to_smem %s22, 32, [#allocation3], [#allocation6]
    $region5: #{tpu_custom_call.1} parent=1 // pred_fallthru
      _
    // Predicated region
    $region6: #{tpu_custom_call.1} parent=1 // pred_check
      _
    $region7: #{tpu_custom_call.1} parent=1 // pred_check_branch
      %26 = sbr.rel (0) target = $region9
    $region8: #{tpu_custom_call.1} parent=1 // pred_region
      %s28 = ssub.s32 16, 16
      %29 = vsyncadd [#allocation8], %s28
      %s31 = sshll.u32 %s1, 4
      %s32 = int_to_ptr.vmem [resolvable:$true] %s31
      %34 = dma.vmem_to_smem %s32, 16, [#allocation7], [#allocation8]
    $region9: #{tpu_custom_call.1} parent=1 // pred_fallthru
      _
    // Predicated region
    $region10: #{tpu_custom_call.1} parent=1 // pred_check
      _
    $region11: #{tpu_custom_call.1} parent=1 // pred_check_branch
      %36 = sbr.rel (0) target = $region13
    $region12: #{tpu_custom_call.1} parent=1 // pred_region
      %s38 = ssub.s32 16, 16
      %39 = vsyncadd [#allocation8], %s38
      %s41 = sshll.u32 %s2, 4
      %s42 = int_to_ptr.vmem [resolvable:$true] %s41
      %44 = dma.vmem_to_smem %s42, 16, [#allocation9], [#allocation8]
    $region13: #{tpu_custom_call.1} parent=1 // pred_fallthru
      _
    // Predicated region
    $region14: #{tpu_custom_call.1} parent=1 // pred_check
      _
    $region15: #{tpu_custom_call.1} parent=1 // pred_check_branch
      %46 = sbr.rel (0) target = $region17
    $region16: #{tpu_custom_call.1} parent=1 // pred_region
      _
    $region17: #{tpu_custom_call.1} parent=1 // pred_fallthru
      _
    // Predicated region
    $region18: #{tpu_custom_call.1} parent=1 // pred_check
      _
    $region19: #{tpu_custom_call.1} parent=1 // pred_check_branch
      %48 = sbr.rel (0) target = $region21
    $region20: #{tpu_custom_call.1} parent=1 // pred_region
      %s50 = ssub.s32 256, 256
      %51 = vsyncadd [#allocation4], %s50
      %s52 = sshll.u32 [#allocation10], 4
      %s53 = int_to_ptr.vmem [resolvable:$true] %s52
      %58 = dma.hbm_to_vmem [thread:$0]  %s4, 256, %s53, [#allocation4], 64, 64, 4
    $region21: #{tpu_custom_call.1} parent=1 // pred_fallthru
      _
    // Predicated region
    $region22: #{tpu_custom_call.1} parent=1 // pred_check
      _
    $region23: #{tpu_custom_call.1} parent=1 // pred_check_branch
      %60 = sbr.rel (0) target = $region25
    $region24: #{tpu_custom_call.1} parent=1 // pred_region
      %61 = dma.done [#allocation6], 32
    $region25: #{tpu_custom_call.1} parent=1 // pred_fallthru
      _
    // Predicated region
    $region26: #{tpu_custom_call.1} parent=1 // pred_check
      _
    $region27: #{tpu_custom_call.1} parent=1 // pred_check_branch
      %63 = sbr.rel (0) target = $region29
    $region28: #{tpu_custom_call.1} parent=1 // pred_region
      %64 = dma.done [#allocation8], 16
    $region29: #{tpu_custom_call.1} parent=1 // pred_fallthru
      _
    // Predicated region
    $region30: #{tpu_custom_call.1} parent=1 // pred_check
      _
    $region31: #{tpu_custom_call.1} parent=1 // pred_check_branch
      %66 = sbr.rel (0) target = $region33
    $region32: #{tpu_custom_call.1} parent=1 // pred_region
      %67 = dma.done [#allocation8], 16
    $region33: #{tpu_custom_call.1} parent=1 // pred_fallthru
      _
    // Predicated region
    $region34: #{tpu_custom_call.1} parent=1 // pred_check
      _
    $region35: #{tpu_custom_call.1} parent=1 // pred_check_branch
      %69 = sbr.rel (0) target = $region37
    $region36: #{tpu_custom_call.1} parent=1 // pred_region
      %70 = dma.done [#allocation4], 256
    $region37: #{tpu_custom_call.1} parent=1 // pred_fallthru
      _
    %71 = sfence
    %v72 = vld [vmem:[#allocation10] sm:$0xf]
    %v73 = vld [vmem:[#allocation10 + $0x4] sm:$0xf]
    %v74 = vunpack.c.l.bf16 %v72
    %v75 = vunpack.c.l.bf16 %v73
    %s76 = scalar_lea.vmem [#allocation10], 8
    %v77 = vld [vmem:[%s76] sm:$0xf]
    %v78 = vld [vmem:[%s76 + $0x4] sm:$0xf]
    %v79 = vunpack.c.l.bf16 %v77
    %v80 = vunpack.c.l.bf16 %v78
    %s81 = sld [smem:[#allocation3]]
    %v82 = vstv %s81
    %v83 = vmul.f32 %v74, %v82
    %v84 = vmul.f32 %v75, %v82
    %s85 = sld [smem:[#allocation3 + $0x80]]
    %v86 = vstv %s85
    %v87 = vmul.f32 %v79, %v86
    %v88 = vmul.f32 %v80, %v86
    %v89 = vadd.f32 %v83, %v87
    %v90 = vadd.f32 %v84, %v88
    %s91 = sld [smem:[#allocation7]]
    %v92 = vstv %s91
    %v93 = vadd.f32 %v89, %v92
    %v94 = vadd.f32 %v90, %v92
    %v95 = vmul.f32 %v93, 0.5
    %v96 = vmul.f32 %v94, 0.5
    %v97 = vtanh.pop %v95
    %v98 = vtanh.pop %v96
    %v99 = vmul.f32 %v97, 0.5
    %v100 = vmul.f32 %v98, 0.5
    %v101 = vadd.f32 %v99, 0.5
    %v102 = vadd.f32 %v100, 0.5
    %s103 = sld [smem:[#allocation3 + $0x1]]
    %v104 = vstv %s103
    %v105 = vmul.f32 %v74, %v104
    %v106 = vmul.f32 %v75, %v104
    %s107 = sld [smem:[#allocation3 + $0x81]]
    %v108 = vstv %s107
    %v109 = vmul.f32 %v79, %v108
    %v110 = vmul.f32 %v80, %v108
    %v111 = vadd.f32 %v105, %v109
    %v112 = vadd.f32 %v106, %v110
    %s113 = sld [smem:[#allocation7 + $0x1]]
    %v114 = vstv %s113
    %v115 = vadd.f32 %v111, %v114
    %v116 = vadd.f32 %v112, %v114
    %v117 = vmul.f32 %v115, 0.5
    %v118 = vmul.f32 %v116, 0.5
    %v119 = vtanh.pop %v117
    %v120 = vtanh.pop %v118
    %v121 = vmul.f32 %v119, 0.5
    %v122 = vmul.f32 %v120, 0.5
    %v123 = vadd.f32 %v121, 0.5
    %v124 = vadd.f32 %v122, 0.5
    %s125 = sld [smem:[#allocation3 + $0x2]]
    %v126 = vstv %s125
    %v127 = vmul.f32 %v74, %v126
    %v128 = vmul.f32 %v75, %v126
    %s129 = sld [smem:[#allocation3 + $0x82]]
    %v130 = vstv %s129
    %v131 = vmul.f32 %v79, %v130
    %v132 = vmul.f32 %v80, %v130
    %v133 = vadd.f32 %v127, %v131
    %v134 = vadd.f32 %v128, %v132
    %s135 = sld [smem:[#allocation7 + $0x2]]
    %v136 = vstv %s135
    %v137 = vadd.f32 %v133, %v136
    %v138 = vadd.f32 %v134, %v136
    %v139 = vmul.f32 %v137, 0.5
    %v140 = vmul.f32 %v138, 0.5
    %v141 = vtanh.pop %v139
    %v142 = vtanh.pop %v140
    %v143 = vmul.f32 %v141, 0.5
    %v144 = vmul.f32 %v142, 0.5
    %v145 = vadd.f32 %v143, 0.5
    %v146 = vadd.f32 %v144, 0.5
    %s147 = sld [smem:[#allocation9]]
    %v148 = vstv %s147
    %v149 = vmul.f32 %v101, %v148
    %v150 = vmul.f32 %v102, %v148
    %s151 = sld [smem:[#allocation9 + $0x1]]
    %v152 = vstv %s151
    %v153 = vmul.f32 %v123, %v152
    %v154 = vmul.f32 %v124, %v152
    %v155 = vadd.f32 %v149, %v153
    %v156 = vadd.f32 %v150, %v154
    %s157 = sld [smem:[#allocation9 + $0x2]]
    %v158 = vstv %s157
    %v159 = vmul.f32 %v145, %v158
    %v160 = vmul.f32 %v146, %v158
    %v161 = vadd.f32 %v155, %v159
    %v162 = vadd.f32 %v156, %v160
    %s163 = sld [smem:[#allocation2]]
    %v164 = vstv %s163
    %v165 = vadd.f32 %v161, %v164
    %v166 = vadd.f32 %v162, %v164
    %v167 = vmul.f32 %v165, 0.5
    %v168 = vmul.f32 %v166, 0.5
    %v169 = vtanh.pop %v167
    %v170 = vtanh.pop %v168
    %v171 = vmul.f32 %v169, 0.5
    %v172 = vmul.f32 %v170, 0.5
    %v173 = vadd.f32 %v171, 0.5
    %v174 = vadd.f32 %v172, 0.5
    %v175 = vpack.c.bf16 %v174, %v173
    %v177 = vunpack.c.l.b16 %v175
    %v178 = vunpack.c.h.b16 %v175
    %v179 = vpack.c.b16 %v177, %v177
    %v180 = vpack.c.b16 %v178, %v178
    %183 = vst [vmem:[#allocation11] sm:$0xf] %v179
    %184 = vst [vmem:[#allocation11 + $0x4] sm:$0xf] %v180
    // Predicated region
    $region38: #{tpu_custom_call.1} parent=1 // pred_check
      _
    $region39: #{tpu_custom_call.1} parent=1 // pred_check_branch
      %186 = sbr.rel (0) target = $region41
    $region40: #{tpu_custom_call.1} parent=1 // pred_region
      %s188 = ssub.s32 128, 128
      %189 = vsyncadd [#allocation5], %s188
      %s190 = sshll.u32 [#allocation11], 4
      %s191 = int_to_ptr.vmem [resolvable:$true] %s190
      %196 = dma.vmem_to_hbm [thread:$0]  %s191, 128, %s5, [#allocation5], 64, 64, 4
    $region41: #{tpu_custom_call.1} parent=1 // pred_fallthru
      _
    // Predicated region
    $region42: #{tpu_custom_call.1} parent=1 // pred_check
      _
    $region43: #{tpu_custom_call.1} parent=1 // pred_check_branch
      %198 = sbr.rel (0) target = $region45
    $region44: #{tpu_custom_call.1} parent=1 // pred_region
      %199 = dma.done [#allocation5], 128
    $region45: #{tpu_custom_call.1} parent=1 // pred_fallthru
      _
    %200 = vsyncpa [#allocation4], 1
    %201 = vsyncpa [#allocation5], 1
    %202 = vsyncpa [#allocation6], 1
    %203 = vsyncpa [#allocation8], 1

</llo_original>
